<compile_context>
chip_gen: v6e
topology: v6e:2x2x1
jax: 0.10.0
libtpu: 0.0.40
codegen_flags: <defaults>
</compile_context>

<pallas_src>
import jax
import jax.numpy as jnp
from jax.experimental import pallas as pl
from jax.experimental.pallas import tpu as pltpu


def _round_up(x, m):
    return ((x + m - 1) // m) * m


# ---------------------------------------------------------------------------
# Kernel
# ---------------------------------------------------------------------------
def actor_forward_kernel(x_ref, w1_ref, w3_ref, wpi_ref,
                         b1_ref, b3_ref, bpi_ref, out_ref):
    # x_ref:   (TB, K1)  weight_dtype (bf16) batch tile
    # w1_ref:  (K1, H)   resident, zero-padded fc1 weight
    # w3_ref:  (H, H)    resident, zero-padded fc3 weight
    # wpi_ref: (H, A)    resident, zero-padded pi-head weight
    # b*_ref:  (1, H/A)  f32 biases
    # out_ref: (TB, A)   f32 lane-dense output tile
    cdt = w1_ref.dtype

    # fc1 + tanh (f32 MXU accumulation; elementwise in f32 for v5e compat)
    h = jnp.dot(x_ref[...], w1_ref[...], preferred_element_type=jnp.float32)
    h = jnp.tanh(h + b1_ref[...])

    # fc3 + tanh (fc2 is unused in the reference forward pass)
    h = jnp.dot(h.astype(cdt), w3_ref[...], preferred_element_type=jnp.float32)
    h = jnp.tanh(h + b3_ref[...])

    # pi head + tanh
    p = jnp.dot(h.astype(cdt), wpi_ref[...], preferred_element_type=jnp.float32)
    out_ref[...] = jnp.tanh(p + bpi_ref[...]).astype(out_ref.dtype)


# ---------------------------------------------------------------------------
# Parameter preparation (hoisted: call ONCE at init, not every forward)
# ---------------------------------------------------------------------------
def prepare_actor_params(w1, b1, w3, b3, wpi, bpi, *,
                         weight_dtype=jnp.bfloat16, hidden_multiple=128):
    """Pad/cast parameters once.  w*: (in, out) pre-transposed; b*: (out,).

    hidden_multiple: use 256 on v6e/v7x (2x256^2 MXU) when fc1_dims is not
    already a multiple of 256; 128 is optimal on v5e (4x128^2 MXU).
    """
    input_dims, fc1_dims = w1.shape
    n_actions = wpi.shape[1]

    K1 = _round_up(input_dims, 128)
    H = _round_up(_round_up(fc1_dims, hidden_multiple), 128)
    A = _round_up(n_actions, 128)

    def pad_w(w, rows, cols):
        out = jnp.zeros((rows, cols), jnp.float32)
        return out.at[: w.shape[0], : w.shape[1]].set(w).astype(weight_dtype)

    def pad_b(b, cols):
        return jnp.zeros((1, cols), jnp.float32).at[0, : b.shape[0]].set(b)

    return dict(
        w1=pad_w(w1, K1, H), w3=pad_w(w3, H, H), wpi=pad_w(wpi, H, A),
        b1=pad_b(b1, H), b3=pad_b(b3, H), bpi=pad_b(bpi, A),
        dims=(int(input_dims), int(fc1_dims), int(n_actions), K1, H, A),
        weight_dtype=weight_dtype,
    )


# ---------------------------------------------------------------------------
# Batch-tile selection
# ---------------------------------------------------------------------------
def _choose_tb(B, block_batch):
    """Pick TB (multiple of 16) minimizing batch padding; keep >=2 grid steps
    when possible so v7x's two TensorCores both get work."""
    B16 = _round_up(max(B, 1), 16)
    target = max(16, min(_round_up(block_batch, 16), B16))
    if B16 > 16:
        half = _round_up((B16 + 1) // 2, 16)
        target = max(16, min(target, half))
    best_tb, best_key = 16, None
    tb = 16
    while tb <= target:
        b_pad = _round_up(B, tb)
        key = (b_pad - B, -tb)   # minimize waste, tie-break toward bigger tiles
        if best_key is None or key < best_key:
            best_key, best_tb = key, tb
        tb += 16
    return best_tb


# ---------------------------------------------------------------------------
# pallas_call builder + forward wrapper
# ---------------------------------------------------------------------------
_HAS_BUFFERED = hasattr(pl, "Buffered")


def _build_call(TB, B_pad, K1, H, A, single_buffer_weights):
    def resident(shape):
        idx = lambda i: (0,) * len(shape)
        if single_buffer_weights and _HAS_BUFFERED:
            try:
                # Constant index_map -> one fetch; single-buffer to save VMEM.
                return pl.BlockSpec(shape, idx, pipeline_mode=pl.Buffered(1))
            except TypeError:
                pass
        return pl.BlockSpec(shape, idx)

    grid_spec = pltpu.PrefetchScalarGridSpec(
        num_scalar_prefetch=0,
        grid=(B_pad // TB,),
        in_specs=[
            pl.BlockSpec((TB, K1), lambda i: (i, 0)),   # state tile (streamed)
            resident((K1, H)),                          # w1
            resident((H, H)),                           # w3
            resident((H, A)),                           # wpi
            resident((1, H)),                           # b1
            resident((1, H)),                           # b3
            resident((1, A)),                           # bpi
        ],
        out_specs=pl.BlockSpec((TB, A), lambda i: (i, 0)),
    )
    return pl.pallas_call(
        actor_forward_kernel,
        out_shape=jax.ShapeDtypeStruct((B_pad, A), jnp.float32),
        grid_spec=grid_spec,
        compiler_params=pltpu.CompilerParams(
            dimension_semantics=("parallel",),  # megacore-shard batch on v7x
        ),
    )


def actor_forward(state, params, *, block_batch=512, single_buffer_weights=True):
    """state: (B, input_dims). Returns (B, n_actions) float32."""
    input_dims, _fc1_dims, n_actions, K1, H, A = params["dims"]
    weight_dtype = params["weight_dtype"]
    B = state.shape[0]

    TB = _choose_tb(B, block_batch)
    B_pad = _round_up(B, TB)

    # Pad + cast input to the MXU operand dtype in the wrapper (halves input DMA).
    x_pad = jnp.zeros((B_pad, K1), weight_dtype).at[:B, :input_dims].set(
        state.astype(weight_dtype))

    args = (x_pad, params["w1"], params["w3"], params["wpi"],
            params["b1"], params["b3"], params["bpi"])

    if single_buffer_weights:
        try:
            out = _build_call(TB, B_pad, K1, H, A, True)(*args)
        except Exception:
            # Fallback for JAX versions without Buffered(1) support.
            out = _build_call(TB, B_pad, K1, H, A, False)(*args)
    else:
        out = _build_call(TB, B_pad, K1, H, A, False)(*args)

    # Drop padded batch rows and padded action lanes.
    return out[:B, :n_actions]


# ---------------------------------------------------------------------------
# Reference + init helpers
# ---------------------------------------------------------------------------
def init_linear_params(key, in_features, out_features):
    """Mimics nn.Linear's uniform(-1/sqrt(in), 1/sqrt(in)) init (transposed)."""
    kw, kb = jax.random.split(key)
    bound = 1.0 / jnp.sqrt(jnp.float32(in_features))
    w = jax.random.uniform(kw, (in_features, out_features), jnp.float32,
                           minval=-bound, maxval=bound)
    b = jax.random.uniform(kb, (out_features,), jnp.float32,
                           minval=-bound, maxval=bound)
    return w, b


def reference_forward(state, w1, b1, w3, b3, wpi, bpi, weight_dtype=jnp.bfloat16):
    """Plain-JAX reference with the same bf16-on-MXU / f32-elementwise math."""
    def layer(x, w, b):
        y = jnp.dot(x.astype(weight_dtype), w.astype(weight_dtype),
                    preferred_element_type=jnp.float32) + b
        return jnp.tanh(y)
    h = layer(state, w1, b1)
    h = layer(h, w3, b3)
    return layer(h, wpi, bpi)


if __name__ == "__main__":
    # Small shapes consistent with ActorNetwork(input_dims, fc1_dims, ..., n_actions)
    batch = 8
    input_dims = 16
    fc1_dims = 32
    n_actions = 4

    key = jax.random.PRNGKey(0)
    k_state, k1, k2, k3, kpi = jax.random.split(key, 5)

    state = jax.random.normal(k_state, (batch, input_dims), jnp.float32)

    w1, b1 = init_linear_params(k1, input_dims, fc1_dims)     # fc1
    _w2, _b2 = init_linear_params(k2, fc1_dims, fc1_dims)     # fc2 (unused in forward)
    w3, b3 = init_linear_params(k3, fc1_dims, fc1_dims)       # fc3
    wpi, bpi = init_linear_params(kpi, fc1_dims, n_actions)   # pi head

    # Parameter padding/casting hoisted out of the per-call path (done once).
    params = prepare_actor_params(w1, b1, w3, b3, wpi, bpi)

    pi = actor_forward(state, params)
    pi = jax.block_until_ready(pi)
    assert pi.shape == (batch, n_actions)

    # Tight check vs a reference using the same bf16-operand / f32-accumulate math.
    ref_bf16 = reference_forward(state, w1, b1, w3, b3, wpi, bpi, jnp.bfloat16)
    assert jnp.allclose(pi, ref_bf16, atol=1e-4, rtol=1e-4), \
        float(jnp.max(jnp.abs(pi - ref_bf16)))

    # Loose check vs the pure-f32 PyTorch-equivalent math (bf16 quantization only).
    ref_f32 = jnp.tanh(jnp.tanh(jnp.tanh(state @ w1 + b1) @ w3 + b3) @ wpi + bpi)
    assert jnp.allclose(pi, ref_f32, atol=3e-2, rtol=3e-2), \
        float(jnp.max(jnp.abs(pi - ref_f32)))

    # Second shape: ragged batch -> multi-step grid (exercises batch tiling,
    # batch-row padding, and the >=2-step megacore path).
    state2 = jax.random.normal(jax.random.PRNGKey(1), (40, input_dims), jnp.float32)
    pi2 = jax.block_until_ready(actor_forward(state2, params))
    assert pi2.shape == (40, n_actions)
    ref2 = reference_forward(state2, w1, b1, w3, b3, wpi, bpi, jnp.bfloat16)
    assert jnp.allclose(pi2, ref2, atol=1e-4, rtol=1e-4), \
        float(jnp.max(jnp.abs(pi2 - ref2)))

    print("KERNEL_OK")
</pallas_src>

<mosaic_0001>
module attributes {stable_mosaic.version = 11 : i64} {
  func.func @actor_forward_kernel(%arg0: i32, %arg1: memref<16x128xbf16, #tpu.memory_space<vmem>>, %arg2: memref<128x128xbf16, #tpu.memory_space<vmem>>, %arg3: memref<128x128xbf16, #tpu.memory_space<vmem>>, %arg4: memref<128x128xbf16, #tpu.memory_space<vmem>>, %arg5: memref<1x128xf32, #tpu.memory_space<vmem>>, %arg6: memref<1x128xf32, #tpu.memory_space<vmem>>, %arg7: memref<1x128xf32, #tpu.memory_space<vmem>>, %arg8: memref<16x128xf32, #tpu.memory_space<vmem>>) attributes {dimension_semantics = [#tpu.dimension_semantics<parallel>], iteration_bounds = array<i64: 1>, scalar_prefetch = 0 : i64, scratch_operands = 0 : i64, tpu.core_type = #tpu.core_type<tc>, window_params = [{transform_indices = @transform_0, window_bounds = array<i64: 16, 128>}, {pipeline_mode = #tpu.pipeline_mode<synchronous>, transform_indices = @transform_1, window_bounds = array<i64: 128, 128>}, {pipeline_mode = #tpu.pipeline_mode<synchronous>, transform_indices = @transform_2, window_bounds = array<i64: 128, 128>}, {pipeline_mode = #tpu.pipeline_mode<synchronous>, transform_indices = @transform_3, window_bounds = array<i64: 128, 128>}, {pipeline_mode = #tpu.pipeline_mode<synchronous>, transform_indices = @transform_4, window_bounds = array<i64: 1, 128>}, {pipeline_mode = #tpu.pipeline_mode<synchronous>, transform_indices = @transform_5, window_bounds = array<i64: 1, 128>}, {pipeline_mode = #tpu.pipeline_mode<synchronous>, transform_indices = @transform_6, window_bounds = array<i64: 1, 128>}, {transform_indices = @transform_7, window_bounds = array<i64: 16, 128>}]} {
    %c0 = arith.constant 0 : index
    %c0_0 = arith.constant 0 : index
    %0 = vector.load %arg1[%c0, %c0_0] : memref<16x128xbf16, #tpu.memory_space<vmem>>, vector<16x128xbf16>
    %c0_1 = arith.constant 0 : index
    %c0_2 = arith.constant 0 : index
    %1 = vector.load %arg2[%c0_1, %c0_2] : memref<128x128xbf16, #tpu.memory_space<vmem>>, vector<128x128xbf16>
    %cst = arith.constant dense<0.000000e+00> : vector<16x128xf32>
    %2 = tpu.matmul %0, %1, %cst {dimension_numbers = #tpu.dot_dimension_numbers<[1], [0], [0], [1], [0, 0, 1, 1], [], []>} : vector<16x128xbf16>, vector<128x128xbf16>, vector<16x128xf32> -> vector<16x128xf32>
    %c0_3 = arith.constant 0 : index
    %c0_4 = arith.constant 0 : index
    %3 = vector.load %arg5[%c0_3, %c0_4] : memref<1x128xf32, #tpu.memory_space<vmem>>, vector<1x128xf32>
    %4 = vector.broadcast %3 : vector<1x128xf32> to vector<16x128xf32>
    %5 = arith.addf %2, %4 : vector<16x128xf32>
    %6 = math.tanh %5 : vector<16x128xf32>
    %7 = arith.truncf %6 : vector<16x128xf32> to vector<16x128xbf16>
    %c0_5 = arith.constant 0 : index
    %c0_6 = arith.constant 0 : index
    %8 = vector.load %arg3[%c0_5, %c0_6] : memref<128x128xbf16, #tpu.memory_space<vmem>>, vector<128x128xbf16>
    %cst_7 = arith.constant dense<0.000000e+00> : vector<16x128xf32>
    %9 = tpu.matmul %7, %8, %cst_7 {dimension_numbers = #tpu.dot_dimension_numbers<[1], [0], [0], [1], [0, 0, 1, 1], [], []>} : vector<16x128xbf16>, vector<128x128xbf16>, vector<16x128xf32> -> vector<16x128xf32>
    %c0_8 = arith.constant 0 : index
    %c0_9 = arith.constant 0 : index
    %10 = vector.load %arg6[%c0_8, %c0_9] : memref<1x128xf32, #tpu.memory_space<vmem>>, vector<1x128xf32>
    %11 = vector.broadcast %10 : vector<1x128xf32> to vector<16x128xf32>
    %12 = arith.addf %9, %11 : vector<16x128xf32>
    %13 = math.tanh %12 : vector<16x128xf32>
    %14 = arith.truncf %13 : vector<16x128xf32> to vector<16x128xbf16>
    %c0_10 = arith.constant 0 : index
    %c0_11 = arith.constant 0 : index
    %15 = vector.load %arg4[%c0_10, %c0_11] : memref<128x128xbf16, #tpu.memory_space<vmem>>, vector<128x128xbf16>
    %cst_12 = arith.constant dense<0.000000e+00> : vector<16x128xf32>
    %16 = tpu.matmul %14, %15, %cst_12 {dimension_numbers = #tpu.dot_dimension_numbers<[1], [0], [0], [1], [0, 0, 1, 1], [], []>} : vector<16x128xbf16>, vector<128x128xbf16>, vector<16x128xf32> -> vector<16x128xf32>
    %c0_13 = arith.constant 0 : index
    %c0_14 = arith.constant 0 : index
    %17 = vector.load %arg7[%c0_13, %c0_14] : memref<1x128xf32, #tpu.memory_space<vmem>>, vector<1x128xf32>
    %18 = vector.broadcast %17 : vector<1x128xf32> to vector<16x128xf32>
    %19 = arith.addf %16, %18 : vector<16x128xf32>
    %20 = math.tanh %19 : vector<16x128xf32>
    %c0_15 = arith.constant 0 : index
    %c0_16 = arith.constant 0 : index
    %21 = vector.load %arg8[%c0_15, %c0_16] : memref<16x128xf32, #tpu.memory_space<vmem>>, vector<16x128xf32>
    tpu.vector_store %arg8[%c0_15, %c0_16], %20 {strides = array<i32>} : memref<16x128xf32, #tpu.memory_space<vmem>>, vector<16x128xf32>,
    return
  }
  func.func @transform_0(%arg0: i32) -> (i32, i32) {
    %c0_i32 = arith.constant 0 : i32
    %c0_i32_0 = arith.constant 0 : i32
    return %arg0, %c0_i32 : i32, i32
  }
  func.func @transform_1(%arg0: i32) -> (i32, i32) {
    %c0_i32 = arith.constant 0 : i32
    %c0_i32_0 = arith.constant 0 : i32
    %c0_i32_1 = arith.constant 0 : i32
    return %c0_i32, %c0_i32_0 : i32, i32
  }
  func.func @transform_2(%arg0: i32) -> (i32, i32) {
    %c0_i32 = arith.constant 0 : i32
    %c0_i32_0 = arith.constant 0 : i32
    %c0_i32_1 = arith.constant 0 : i32
    return %c0_i32, %c0_i32_0 : i32, i32
  }
  func.func @transform_3(%arg0: i32) -> (i32, i32) {
    %c0_i32 = arith.constant 0 : i32
    %c0_i32_0 = arith.constant 0 : i32
    %c0_i32_1 = arith.constant 0 : i32
    return %c0_i32, %c0_i32_0 : i32, i32
  }
  func.func @transform_4(%arg0: i32) -> (i32, i32) {
    %c0_i32 = arith.constant 0 : i32
    %c0_i32_0 = arith.constant 0 : i32
    %c0_i32_1 = arith.constant 0 : i32
    return %c0_i32, %c0_i32_0 : i32, i32
  }
  func.func @transform_5(%arg0: i32) -> (i32, i32) {
    %c0_i32 = arith.constant 0 : i32
    %c0_i32_0 = arith.constant 0 : i32
    %c0_i32_1 = arith.constant 0 : i32
    return %c0_i32, %c0_i32_0 : i32, i32
  }
  func.func @transform_6(%arg0: i32) -> (i32, i32) {
    %c0_i32 = arith.constant 0 : i32
    %c0_i32_0 = arith.constant 0 : i32
    %c0_i32_1 = arith.constant 0 : i32
    return %c0_i32, %c0_i32_0 : i32, i32
  }
  func.func @transform_7(%arg0: i32) -> (i32, i32) {
    %c0_i32 = arith.constant 0 : i32
    %c0_i32_0 = arith.constant 0 : i32
    return %arg0, %c0_i32 : i32, i32
  }
}

module attributes {stable_mosaic.version = 11 : i64} {
  func.func @actor_forward_kernel(%arg0: i32, %arg1: memref<16x128xbf16, #tpu.memory_space<vmem>>, %arg2: memref<128x128xbf16, #tpu.memory_space<vmem>>, %arg3: memref<128x128xbf16, #tpu.memory_space<vmem>>, %arg4: memref<128x128xbf16, #tpu.memory_space<vmem>>, %arg5: memref<1x128xf32, #tpu.memory_space<vmem>>, %arg6: memref<1x128xf32, #tpu.memory_space<vmem>>, %arg7: memref<1x128xf32, #tpu.memory_space<vmem>>, %arg8: memref<16x128xf32, #tpu.memory_space<vmem>>) attributes {dimension_semantics = [#tpu.dimension_semantics<parallel>], iteration_bounds = array<i64: 1>, scalar_prefetch = 0 : i64, scratch_operands = 0 : i64, tpu.core_type = #tpu.core_type<tc>, window_params = [{transform_indices = @transform_0, window_bounds = array<i64: 16, 128>}, {pipeline_mode = #tpu.pipeline_mode<synchronous>, transform_indices = @transform_1, window_bounds = array<i64: 128, 128>}, {pipeline_mode = #tpu.pipeline_mode<synchronous>, transform_indices = @transform_2, window_bounds = array<i64: 128, 128>}, {pipeline_mode = #tpu.pipeline_mode<synchronous>, transform_indices = @transform_3, window_bounds = array<i64: 128, 128>}, {pipeline_mode = #tpu.pipeline_mode<synchronous>, transform_indices = @transform_4, window_bounds = array<i64: 1, 128>}, {pipeline_mode = #tpu.pipeline_mode<synchronous>, transform_indices = @transform_5, window_bounds = array<i64: 1, 128>}, {pipeline_mode = #tpu.pipeline_mode<synchronous>, transform_indices = @transform_6, window_bounds = array<i64: 1, 128>}, {transform_indices = @transform_7, window_bounds = array<i64: 16, 128>}]} {
    %c0 = arith.constant 0 : index
    %c0_0 = arith.constant 0 : index
    %0 = vector.load %arg1[%c0, %c0_0] : memref<16x128xbf16, #tpu.memory_space<vmem>>, vector<16x128xbf16>
    %c0_1 = arith.constant 0 : index
    %c0_2 = arith.constant 0 : index
    %1 = vector.load %arg2[%c0_1, %c0_2] : memref<128x128xbf16, #tpu.memory_space<vmem>>, vector<128x128xbf16>
    %cst = arith.constant dense<0.000000e+00> : vector<16x128xf32>
    %2 = tpu.matmul %0, %1, %cst {dimension_numbers = #tpu.dot_dimension_numbers<[1], [0], [0], [1], [0, 0, 1, 1], [], []>} : vector<16x128xbf16>, vector<128x128xbf16>, vector<16x128xf32> -> vector<16x128xf32>
    %c0_3 = arith.constant 0 : index
    %c0_4 = arith.constant 0 : index
    %3 = vector.load %arg5[%c0_3, %c0_4] : memref<1x128xf32, #tpu.memory_space<vmem>>, vector<1x128xf32>
    %4 = vector.broadcast %3 : vector<1x128xf32> to vector<16x128xf32>
    %5 = arith.addf %2, %4 : vector<16x128xf32>
    %6 = math.tanh %5 : vector<16x128xf32>
    %7 = arith.truncf %6 : vector<16x128xf32> to vector<16x128xbf16>
    %c0_5 = arith.constant 0 : index
    %c0_6 = arith.constant 0 : index
    %8 = vector.load %arg3[%c0_5, %c0_6] : memref<128x128xbf16, #tpu.memory_space<vmem>>, vector<128x128xbf16>
    %cst_7 = arith.constant dense<0.000000e+00> : vector<16x128xf32>
    %9 = tpu.matmul %7, %8, %cst_7 {dimension_numbers = #tpu.dot_dimension_numbers<[1], [0], [0], [1], [0, 0, 1, 1], [], []>} : vector<16x128xbf16>, vector<128x128xbf16>, vector<16x128xf32> -> vector<16x128xf32>
    %c0_8 = arith.constant 0 : index
    %c0_9 = arith.constant 0 : index
    %10 = vector.load %arg6[%c0_8, %c0_9] : memref<1x128xf32, #tpu.memory_space<vmem>>, vector<1x128xf32>
    %11 = vector.broadcast %10 : vector<1x128xf32> to vector<16x128xf32>
    %12 = arith.addf %9, %11 : vector<16x128xf32>
    %13 = math.tanh %12 : vector<16x128xf32>
    %14 = arith.truncf %13 : vector<16x128xf32> to vector<16x128xbf16>
    %c0_10 = arith.constant 0 : index
    %c0_11 = arith.constant 0 : index
    %15 = vector.load %arg4[%c0_10, %c0_11] : memref<128x128xbf16, #tpu.memory_space<vmem>>, vector<128x128xbf16>
    %cst_12 = arith.constant dense<0.000000e+00> : vector<16x128xf32>
    %16 = tpu.matmul %14, %15, %cst_12 {dimension_numbers = #tpu.dot_dimension_numbers<[1], [0], [0], [1], [0, 0, 1, 1], [], []>} : vector<16x128xbf16>, vector<128x128xbf16>, vector<16x128xf32> -> vector<16x128xf32>
    %c0_13 = arith.constant 0 : index
    %c0_14 = arith.constant 0 : index
    %17 = vector.load %arg7[%c0_13, %c0_14] : memref<1x128xf32, #tpu.memory_space<vmem>>, vector<1x128xf32>
    %18 = vector.broadcast %17 : vector<1x128xf32> to vector<16x128xf32>
    %19 = arith.addf %16, %18 : vector<16x128xf32>
    %20 = math.tanh %19 : vector<16x128xf32>
    %c0_15 = arith.constant 0 : index
    %c0_16 = arith.constant 0 : index
    %21 = vector.load %arg8[%c0_15, %c0_16] : memref<16x128xf32, #tpu.memory_space<vmem>>, vector<16x128xf32>
    tpu.vector_store %arg8[%c0_15, %c0_16], %20 {strides = array<i32>} : memref<16x128xf32, #tpu.memory_space<vmem>>, vector<16x128xf32>,
    return
  }
  func.func @transform_0(%arg0: i32) -> (i32, i32) {
    %c0_i32 = arith.constant 0 : i32
    %c0_i32_0 = arith.constant 0 : i32
    return %arg0, %c0_i32 : i32, i32
  }
  func.func @transform_1(%arg0: i32) -> (i32, i32) {
    %c0_i32 = arith.constant 0 : i32
    %c0_i32_0 = arith.constant 0 : i32
    %c0_i32_1 = arith.constant 0 : i32
    return %c0_i32, %c0_i32_0 : i32, i32
  }
  func.func @transform_2(%arg0: i32) -> (i32, i32) {
    %c0_i32 = arith.constant 0 : i32
    %c0_i32_0 = arith.constant 0 : i32
    %c0_i32_1 = arith.constant 0 : i32
    return %c0_i32, %c0_i32_0 : i32, i32
  }
  func.func @transform_3(%arg0: i32) -> (i32, i32) {
    %c0_i32 = arith.constant 0 : i32
    %c0_i32_0 = arith.constant 0 : i32
    %c0_i32_1 = arith.constant 0 : i32
    return %c0_i32, %c0_i32_0 : i32, i32
  }
  func.func @transform_4(%arg0: i32) -> (i32, i32) {
    %c0_i32 = arith.constant 0 : i32
    %c0_i32_0 = arith.constant 0 : i32
    %c0_i32_1 = arith.constant 0 : i32
    return %c0_i32, %c0_i32_0 : i32, i32
  }
  func.func @transform_5(%arg0: i32) -> (i32, i32) {
    %c0_i32 = arith.constant 0 : i32
    %c0_i32_0 = arith.constant 0 : i32
    %c0_i32_1 = arith.constant 0 : i32
    return %c0_i32, %c0_i32_0 : i32, i32
  }
  func.func @transform_6(%arg0: i32) -> (i32, i32) {
    %c0_i32 = arith.constant 0 : i32
    %c0_i32_0 = arith.constant 0 : i32
    %c0_i32_1 = arith.constant 0 : i32
    return %c0_i32, %c0_i32_0 : i32, i32
  }
  func.func @transform_7(%arg0: i32) -> (i32, i32) {
    %c0_i32 = arith.constant 0 : i32
    %c0_i32_0 = arith.constant 0 : i32
    return %arg0, %c0_i32 : i32, i32
  }
}

</mosaic_0001>

<llo_original>
// kernel: tpu_custom_call.1
$region0: #{tpu_custom_call.1}
  #allocation0 [shape = 'u32[]', space=smem, size = 0x4, offset = 0x4, fixed_abs, tag = 'smem constant byte address 0x4 - core index']
  #allocation1 [shape = 'u32[144,128]{1,0:T(1,128)}', space=vmem, size = 0x12000, scoped, tag = 'internal scratch']
  %s0 = inlined_call_operand.hbm [shape: bf16[16,128], index: 0, kind: input, shape index: {}]
  %s1 = inlined_call_operand.hbm [shape: bf16[128,128], index: 1, kind: input, shape index: {}]
  %s2 = inlined_call_operand.hbm [shape: bf16[128,128], index: 2, kind: input, shape index: {}]
  %s3 = inlined_call_operand.hbm [shape: bf16[128,128], index: 3, kind: input, shape index: {}]
  %s4 = inlined_call_operand.vmem [shape: f32[1,128], index: 4, kind: input, shape index: {}]
  %s5 = inlined_call_operand.vmem [shape: f32[1,128], index: 5, kind: input, shape index: {}]
  %s6 = inlined_call_operand.vmem [shape: f32[1,128], index: 6, kind: input, shape index: {}]
  %s7 = inlined_call_operand.hbm [shape: f32[16,128], index: 7, kind: output, shape index: {}]
  %s8 = sld [smem:[#allocation0]]
  $region54: #{tpu_custom_call.1} parent=0
    _
  %s10 = ssub.s32 1, %s8
  %s11 = scalar_select 0, %s10, %s8
  $region1: #{tpu_custom_call.1} parent=0
    #allocation2 [shape = 'u8[4096]{0}', space=vmem, size = 0x1000, scoped, tag = 'input window, operand 0, single buffered']
    #allocation3 [shape = 's32[1]{0}', space=sflag, size = 0x4, scoped, tag = 'scoped memory for tpu_custom_call.1']
    #allocation4 [shape = 's32[1]{0}', space=sflag, size = 0x4, scoped, tag = 'scoped memory for tpu_custom_call.1']
    #allocation5 [shape = 'u8[32768]{0}', space=vmem, size = 0x8000, scoped, tag = 'input window, operand 1, single buffered']
    #allocation6 [shape = 's32[1]{0}', space=sflag, size = 0x4, scoped, tag = 'scoped memory for tpu_custom_call.1']
    #allocation7 [shape = 'u8[32768]{0}', space=vmem, size = 0x8000, scoped, tag = 'input window, operand 2, single buffered']
    #allocation8 [shape = 'u8[32768]{0}', space=vmem, size = 0x8000, scoped, tag = 'input window, operand 3, single buffered']
    #allocation9 [shape = 's32[1]{0}', space=sflag, size = 0x4, scoped, tag = 'scoped memory for tpu_custom_call.1']
    #allocation10 [shape = 'u8[8192]{0}', space=vmem, size = 0x2000, scoped, tag = 'output window, operand 0, single buffered']
    %12 = vsyncpa [#allocation3], 0
    %13 = vsyncpa [#allocation6], 0
    %14 = vsyncpa [#allocation9], 0
    %15 = vsyncpa [#allocation4], 0
    // Predicated region
    $region2: #{tpu_custom_call.1} parent=1 // pred_check
      _
    $region3: #{tpu_custom_call.1} parent=1 // pred_check_branch
      %17 = sbr.rel (0) target = $region5
    $region4: #{tpu_custom_call.1} parent=1 // pred_region
      %s19 = ssub.s32 128, 128
      %20 = vsyncadd [#allocation3], %s19
      %s21 = sshll.u32 [#allocation2], 4
      %s22 = int_to_ptr.vmem [resolvable:$true] %s21
      %27 = dma.hbm_to_vmem [thread:$0]  %s0, 128, %s22, [#allocation3], 64, 64, 4
    $region5: #{tpu_custom_call.1} parent=1 // pred_fallthru
      _
    // Predicated region
    $region6: #{tpu_custom_call.1} parent=1 // pred_check
      _
    $region7: #{tpu_custom_call.1} parent=1 // pred_check_branch
      %29 = sbr.rel (0) target = $region9
    $region8: #{tpu_custom_call.1} parent=1 // pred_region
      %s31 = ssub.s32 1024, 1024
      %32 = vsyncadd [#allocation6], %s31
      %s33 = sshll.u32 [#allocation5], 4
      %s34 = int_to_ptr.vmem [resolvable:$true] %s33
      %39 = dma.hbm_to_vmem [thread:$0]  %s1, 1024, %s34, [#allocation6], 64, 64, 4
    $region9: #{tpu_custom_call.1} parent=1 // pred_fallthru
      _
    // Predicated region
    $region10: #{tpu_custom_call.1} parent=1 // pred_check
      _
    $region11: #{tpu_custom_call.1} parent=1 // pred_check_branch
      %41 = sbr.rel (0) target = $region13
    $region12: #{tpu_custom_call.1} parent=1 // pred_region
      %s43 = ssub.s32 1024, 1024
      %44 = vsyncadd [#allocation6], %s43
      %s45 = sshll.u32 [#allocation7], 4
      %s46 = int_to_ptr.vmem [resolvable:$true] %s45
      %51 = dma.hbm_to_vmem [thread:$0]  %s2, 1024, %s46, [#allocation6], 64, 64, 4
    $region13: #{tpu_custom_call.1} parent=1 // pred_fallthru
      _
    // Predicated region
    $region14: #{tpu_custom_call.1} parent=1 // pred_check
      _
    $region15: #{tpu_custom_call.1} parent=1 // pred_check_branch
      %53 = sbr.rel (0) target = $region17
    $region16: #{tpu_custom_call.1} parent=1 // pred_region
      %s55 = ssub.s32 1024, 1024
      %56 = vsyncadd [#allocation9], %s55
      %s57 = sshll.u32 [#allocation8], 4
      %s58 = int_to_ptr.vmem [resolvable:$true] %s57
      %63 = dma.hbm_to_vmem [thread:$0]  %s3, 1024, %s58, [#allocation9], 64, 64, 4
    $region17: #{tpu_custom_call.1} parent=1 // pred_fallthru
      _
    // Predicated region
    $region18: #{tpu_custom_call.1} parent=1 // pred_check
      _
    $region19: #{tpu_custom_call.1} parent=1 // pred_check_branch
      %65 = sbr.rel (0) target = $region21
    $region20: #{tpu_custom_call.1} parent=1 // pred_region
      _
    $region21: #{tpu_custom_call.1} parent=1 // pred_fallthru
      _
    // Predicated region
    $region22: #{tpu_custom_call.1} parent=1 // pred_check
      _
    $region23: #{tpu_custom_call.1} parent=1 // pred_check_branch
      %67 = sbr.rel (0) target = $region25
    $region24: #{tpu_custom_call.1} parent=1 // pred_region
      _
    $region25: #{tpu_custom_call.1} parent=1 // pred_fallthru
      _
    // Predicated region
    $region26: #{tpu_custom_call.1} parent=1 // pred_check
      _
    $region27: #{tpu_custom_call.1} parent=1 // pred_check_branch
      %69 = sbr.rel (0) target = $region29
    $region28: #{tpu_custom_call.1} parent=1 // pred_region
      _
    $region29: #{tpu_custom_call.1} parent=1 // pred_fallthru
      _
    // Predicated region
    $region30: #{tpu_custom_call.1} parent=1 // pred_check
      _
    $region31: #{tpu_custom_call.1} parent=1 // pred_check_branch
      %71 = sbr.rel (0) target = $region33
    $region32: #{tpu_custom_call.1} parent=1 // pred_region
      %72 = dma.done [#allocation3], 128
    $region33: #{tpu_custom_call.1} parent=1 // pred_fallthru
      _
    // Predicated region
    $region34: #{tpu_custom_call.1} parent=1 // pred_check
      _
    $region35: #{tpu_custom_call.1} parent=1 // pred_check_branch
      %74 = sbr.rel (0) target = $region37
    $region36: #{tpu_custom_call.1} parent=1 // pred_region
      %75 = dma.done [#allocation6], 1024
    $region37: #{tpu_custom_call.1} parent=1 // pred_fallthru
      _
    // Predicated region
    $region38: #{tpu_custom_call.1} parent=1 // pred_check
      _
    $region39: #{tpu_custom_call.1} parent=1 // pred_check_branch
      %77 = sbr.rel (0) target = $region41
    $region40: #{tpu_custom_call.1} parent=1 // pred_region
      %78 = dma.done [#allocation6], 1024
    $region41: #{tpu_custom_call.1} parent=1 // pred_fallthru
      _
    // Predicated region
    $region42: #{tpu_custom_call.1} parent=1 // pred_check
      _
    $region43: #{tpu_custom_call.1} parent=1 // pred_check_branch
      %80 = sbr.rel (0) target = $region45
    $region44: #{tpu_custom_call.1} parent=1 // pred_region
      %81 = dma.done [#allocation9], 1024
    $region45: #{tpu_custom_call.1} parent=1 // pred_fallthru
      _
    %v83 = vld [vmem:[#allocation2] sm:$0xf]
    %v84 = vld [vmem:[#allocation2 + $0x4] sm:$0xf]
    %v85 = vld [vmem:[#allocation5] sm:$0xf]
    %v86 = vld [vmem:[#allocation5 + $0x4] sm:$0xf]
    %v87 = vld [vmem:[#allocation5 + $0x8] sm:$0xf]
    %v88 = vld [vmem:[#allocation5 + $0xc] sm:$0xf]
    %v89 = vld [vmem:[#allocation5 + $0x10] sm:$0xf]
    %v90 = vld [vmem:[#allocation5 + $0x14] sm:$0xf]
    %v91 = vld [vmem:[#allocation5 + $0x18] sm:$0xf]
    %v92 = vld [vmem:[#allocation5 + $0x1c] sm:$0xf]
    %v93 = vld [vmem:[#allocation5 + $0x20] sm:$0xf]
    %v94 = vld [vmem:[#allocation5 + $0x24] sm:$0xf]
    %v95 = vld [vmem:[#allocation5 + $0x28] sm:$0xf]
    %v96 = vld [vmem:[#allocation5 + $0x2c] sm:$0xf]
    %v97 = vld [vmem:[#allocation5 + $0x30] sm:$0xf]
    %v98 = vld [vmem:[#allocation5 + $0x34] sm:$0xf]
    %v99 = vld [vmem:[#allocation5 + $0x38] sm:$0xf]
    %v100 = vld [vmem:[#allocation5 + $0x3c] sm:$0xf]
    %v101 = vld [vmem:[%s4] sm:$0x1]
    %v103 = vlaneseq
    %v104 = vshrl.u32 %v103, 7
    %v105 = vsub.s32 0, %v104
    %v106 = vrot.slane %v101, %v105
    %v110 = vunpack.c.l.b16 %v83
    %v111 = vunpack.c.l.b16 %v84
    %v112 = vpack.c.b16 %v111, %v110
    %v130 = vunpack.c.l.b16 %v85
    %v131 = vunpack.c.l.b16 %v86
    %v132 = vunpack.c.l.b16 %v87
    %v133 = vunpack.c.l.b16 %v88
    %v134 = vunpack.c.l.b16 %v89
    %v135 = vunpack.c.l.b16 %v90
    %v136 = vunpack.c.l.b16 %v91
    %v137 = vunpack.c.l.b16 %v92
    %v138 = vunpack.c.l.b16 %v93
    %v139 = vunpack.c.l.b16 %v94
    %v140 = vunpack.c.l.b16 %v95
    %v141 = vunpack.c.l.b16 %v96
    %v142 = vunpack.c.l.b16 %v97
    %v143 = vunpack.c.l.b16 %v98
    %v144 = vunpack.c.l.b16 %v99
    %v145 = vunpack.c.l.b16 %v100
    %v146 = vpack.c.b16 %v131, %v130
    %v147 = vpack.c.b16 %v133, %v132
    %v148 = vpack.c.b16 %v135, %v134
    %v149 = vpack.c.b16 %v137, %v136
    %v150 = vpack.c.b16 %v139, %v138
    %v151 = vpack.c.b16 %v141, %v140
    %v152 = vpack.c.b16 %v143, %v142
    %v153 = vpack.c.b16 %v145, %v144
    %162 = vmatprep.subr.bf16.mxu0 0
    %163 = vmatpush1.bf16.msra.mxu0 %v153
    %164 = vmatprep.subr.bf16.mxu0 0
    %165 = vmatpush1.bf16.msra.mxu0 %v152
    %166 = vmatprep.subr.bf16.mxu0 0
    %167 = vmatpush1.bf16.msra.mxu0 %v151
    %168 = vmatprep.subr.bf16.mxu0 0
    %169 = vmatpush1.bf16.msra.mxu0 %v150
    %170 = vmatprep.subr.bf16.mxu0 0
    %171 = vmatpush1.bf16.msra.mxu0 %v149
    %172 = vmatprep.subr.bf16.mxu0 0
    %173 = vmatpush1.bf16.msra.mxu0 %v148
    %174 = vmatprep.subr.bf16.mxu0 0
    %175 = vmatpush1.bf16.msra.mxu0 %v147
    %176 = vmatprep.subr.bf16.mxu0 0
    %177 = vmatpush1.bf16.msra.mxu0 %v146
    %178 = vmatprep.subr.bf16.mxu0 0
    %179 = vmatpush2.bf16.msra.mxu0 0
    %180 = vmatprep.subr.bf16.mxu0 0
    %181 = vmatpush2.bf16.msra.mxu0 0
    %182 = vmatprep.subr.bf16.mxu0 0
    %183 = vmatpush2.bf16.msra.mxu0 0
    %184 = vmatprep.subr.bf16.mxu0 0
    %185 = vmatpush2.bf16.msra.mxu0 0
    %186 = vmatprep.subr.bf16.mxu0 0
    %187 = vmatpush2.bf16.msra.mxu0 0
    %188 = vmatprep.subr.bf16.mxu0 0
    %189 = vmatpush2.bf16.msra.mxu0 0
    %190 = vmatprep.subr.bf16.mxu0 0
    %191 = vmatpush2.bf16.msra.mxu0 0
    %192 = vmatprep.subr.bf16.mxu0 0
    %193 = vmatpush2.bf16.msra.mxu0 0
    %194 = vmatprep.mubr.bf16.mxu0 0
    %195 = vmatmul.mubr.bf16.gmra.mxu0 %v112
    %v196 = vpop.f32.mrf.mxu0
    %v197 = vadd.f32 %v106, %v196
    %v198 = vpop.f32.mrf.mxu0
    %v199 = vpop.f32.mrf.mxu0
    %v200 = vadd.f32 %v106, %v199
    %v201 = vpop.f32.mrf.mxu0
    %202 = vdwg.mxu0
    %v203 = vtanh.pop %v197
    %v204 = vtanh.pop %v200
    %v205 = vpack.c.bf16 %v204, %v203
    %v206 = vld [vmem:[#allocation7] sm:$0xf]
    %v207 = vld [vmem:[#allocation7 + $0x4] sm:$0xf]
    %v208 = vld [vmem:[#allocation7 + $0x8] sm:$0xf]
    %v209 = vld [vmem:[#allocation7 + $0xc] sm:$0xf]
    %v210 = vld [vmem:[#allocation7 + $0x10] sm:$0xf]
    %v211 = vld [vmem:[#allocation7 + $0x14] sm:$0xf]
    %v212 = vld [vmem:[#allocation7 + $0x18] sm:$0xf]
    %v213 = vld [vmem:[#allocation7 + $0x1c] sm:$0xf]
    %v214 = vld [vmem:[#allocation7 + $0x20] sm:$0xf]
    %v215 = vld [vmem:[#allocation7 + $0x24] sm:$0xf]
    %v216 = vld [vmem:[#allocation7 + $0x28] sm:$0xf]
    %v217 = vld [vmem:[#allocation7 + $0x2c] sm:$0xf]
    %v218 = vld [vmem:[#allocation7 + $0x30] sm:$0xf]
    %v219 = vld [vmem:[#allocation7 + $0x34] sm:$0xf]
    %v220 = vld [vmem:[#allocation7 + $0x38] sm:$0xf]
    %v221 = vld [vmem:[#allocation7 + $0x3c] sm:$0xf]
    %v222 = vld [vmem:[%s5] sm:$0x1]
    %v224 = vlaneseq
    %v225 = vshrl.u32 %v224, 7
    %v226 = vsub.s32 0, %v225
    %v227 = vrot.slane %v222, %v226
    %v245 = vunpack.c.l.b16 %v206
    %v246 = vunpack.c.l.b16 %v207
    %v247 = vunpack.c.l.b16 %v208
    %v248 = vunpack.c.l.b16 %v209
    %v249 = vunpack.c.l.b16 %v210
    %v250 = vunpack.c.l.b16 %v211
    %v251 = vunpack.c.l.b16 %v212
    %v252 = vunpack.c.l.b16 %v213
    %v253 = vunpack.c.l.b16 %v214
    %v254 = vunpack.c.l.b16 %v215
    %v255 = vunpack.c.l.b16 %v216
    %v256 = vunpack.c.l.b16 %v217
    %v257 = vunpack.c.l.b16 %v218
    %v258 = vunpack.c.l.b16 %v219
    %v259 = vunpack.c.l.b16 %v220
    %v260 = vunpack.c.l.b16 %v221
    %v261 = vpack.c.b16 %v246, %v245
    %v262 = vpack.c.b16 %v248, %v247
    %v263 = vpack.c.b16 %v250, %v249
    %v264 = vpack.c.b16 %v252, %v251
    %v265 = vpack.c.b16 %v254, %v253
    %v266 = vpack.c.b16 %v256, %v255
    %v267 = vpack.c.b16 %v258, %v257
    %v268 = vpack.c.b16 %v260, %v259
    %277 = vmatprep.subr.bf16.mxu0 0
    %278 = vmatpush1.bf16.msra.mxu0 %v268
    %279 = vmatprep.subr.bf16.mxu0 0
    %280 = vmatpush1.bf16.msra.mxu0 %v267
    %281 = vmatprep.subr.bf16.mxu0 0
    %282 = vmatpush1.bf16.msra.mxu0 %v266
    %283 = vmatprep.subr.bf16.mxu0 0
    %284 = vmatpush1.bf16.msra.mxu0 %v265
    %285 = vmatprep.subr.bf16.mxu0 0
    %286 = vmatpush1.bf16.msra.mxu0 %v264
    %287 = vmatprep.subr.bf16.mxu0 0
    %288 = vmatpush1.bf16.msra.mxu0 %v263
    %289 = vmatprep.subr.bf16.mxu0 0
    %290 = vmatpush1.bf16.msra.mxu0 %v262
    %291 = vmatprep.subr.bf16.mxu0 0
    %292 = vmatpush1.bf16.msra.mxu0 %v261
    %293 = vmatprep.subr.bf16.mxu0 0
    %294 = vmatpush2.bf16.msra.mxu0 0
    %295 = vmatprep.subr.bf16.mxu0 0
    %296 = vmatpush2.bf16.msra.mxu0 0
    %297 = vmatprep.subr.bf16.mxu0 0
    %298 = vmatpush2.bf16.msra.mxu0 0
    %299 = vmatprep.subr.bf16.mxu0 0
    %300 = vmatpush2.bf16.msra.mxu0 0
    %301 = vmatprep.subr.bf16.mxu0 0
    %302 = vmatpush2.bf16.msra.mxu0 0
    %303 = vmatprep.subr.bf16.mxu0 0
    %304 = vmatpush2.bf16.msra.mxu0 0
    %305 = vmatprep.subr.bf16.mxu0 0
    %306 = vmatpush2.bf16.msra.mxu0 0
    %307 = vmatprep.subr.bf16.mxu0 0
    %308 = vmatpush2.bf16.msra.mxu0 0
    %309 = vmatprep.mubr.bf16.mxu0 0
    %310 = vmatmul.mubr.bf16.gmra.mxu0 %v205
    %v311 = vpop.f32.mrf.mxu0
    %v312 = vadd.f32 %v227, %v311
    %v313 = vpop.f32.mrf.mxu0
    %v314 = vpop.f32.mrf.mxu0
    %v315 = vadd.f32 %v227, %v314
    %v316 = vpop.f32.mrf.mxu0
    %317 = vdwg.mxu0
    %v318 = vtanh.pop %v312
    %v319 = vtanh.pop %v315
    %v320 = vpack.c.bf16 %v319, %v318
    %v321 = vld [vmem:[#allocation8] sm:$0xf]
    %v322 = vld [vmem:[#allocation8 + $0x4] sm:$0xf]
    %v323 = vld [vmem:[#allocation8 + $0x8] sm:$0xf]
    %v324 = vld [vmem:[#allocation8 + $0xc] sm:$0xf]
    %v325 = vld [vmem:[#allocation8 + $0x10] sm:$0xf]
    %v326 = vld [vmem:[#allocation8 + $0x14] sm:$0xf]
    %v327 = vld [vmem:[#allocation8 + $0x18] sm:$0xf]
    %v328 = vld [vmem:[#allocation8 + $0x1c] sm:$0xf]
    %v329 = vld [vmem:[#allocation8 + $0x20] sm:$0xf]
    %v330 = vld [vmem:[#allocation8 + $0x24] sm:$0xf]
    %v331 = vld [vmem:[#allocation8 + $0x28] sm:$0xf]
    %v332 = vld [vmem:[#allocation8 + $0x2c] sm:$0xf]
    %v333 = vld [vmem:[#allocation8 + $0x30] sm:$0xf]
    %v334 = vld [vmem:[#allocation8 + $0x34] sm:$0xf]
    %v335 = vld [vmem:[#allocation8 + $0x38] sm:$0xf]
    %v336 = vld [vmem:[#allocation8 + $0x3c] sm:$0xf]
    %v337 = vld [vmem:[%s6] sm:$0x1]
    %v339 = vlaneseq
    %v340 = vshrl.u32 %v339, 7
    %v341 = vsub.s32 0, %v340
    %v342 = vrot.slane %v337, %v341
    %v360 = vunpack.c.l.b16 %v321
    %v361 = vunpack.c.l.b16 %v322
    %v362 = vunpack.c.l.b16 %v323
    %v363 = vunpack.c.l.b16 %v324
    %v364 = vunpack.c.l.b16 %v325
    %v365 = vunpack.c.l.b16 %v326
    %v366 = vunpack.c.l.b16 %v327
    %v367 = vunpack.c.l.b16 %v328
    %v368 = vunpack.c.l.b16 %v329
    %v369 = vunpack.c.l.b16 %v330
    %v370 = vunpack.c.l.b16 %v331
    %v371 = vunpack.c.l.b16 %v332
    %v372 = vunpack.c.l.b16 %v333
    %v373 = vunpack.c.l.b16 %v334
    %v374 = vunpack.c.l.b16 %v335
    %v375 = vunpack.c.l.b16 %v336
    %v376 = vpack.c.b16 %v361, %v360
    %v377 = vpack.c.b16 %v363, %v362
    %v378 = vpack.c.b16 %v365, %v364
    %v379 = vpack.c.b16 %v367, %v366
    %v380 = vpack.c.b16 %v369, %v368
    %v381 = vpack.c.b16 %v371, %v370
    %v382 = vpack.c.b16 %v373, %v372
    %v383 = vpack.c.b16 %v375, %v374
    %392 = vmatprep.subr.bf16.mxu0 0
    %393 = vmatpush1.bf16.msra.mxu0 %v383
    %394 = vmatprep.subr.bf16.mxu0 0
    %395 = vmatpush1.bf16.msra.mxu0 %v382
    %396 = vmatprep.subr.bf16.mxu0 0
    %397 = vmatpush1.bf16.msra.mxu0 %v381
    %398 = vmatprep.subr.bf16.mxu0 0
    %399 = vmatpush1.bf16.msra.mxu0 %v380
    %400 = vmatprep.subr.bf16.mxu0 0
    %401 = vmatpush1.bf16.msra.mxu0 %v379
    %402 = vmatprep.subr.bf16.mxu0 0
    %403 = vmatpush1.bf16.msra.mxu0 %v378
    %404 = vmatprep.subr.bf16.mxu0 0
    %405 = vmatpush1.bf16.msra.mxu0 %v377
    %406 = vmatprep.subr.bf16.mxu0 0
    %407 = vmatpush1.bf16.msra.mxu0 %v376
    %408 = vmatprep.subr.bf16.mxu0 0
    %409 = vmatpush2.bf16.msra.mxu0 0
    %410 = vmatprep.subr.bf16.mxu0 0
    %411 = vmatpush2.bf16.msra.mxu0 0
    %412 = vmatprep.subr.bf16.mxu0 0
    %413 = vmatpush2.bf16.msra.mxu0 0
    %414 = vmatprep.subr.bf16.mxu0 0
    %415 = vmatpush2.bf16.msra.mxu0 0
    %416 = vmatprep.subr.bf16.mxu0 0
    %417 = vmatpush2.bf16.msra.mxu0 0
    %418 = vmatprep.subr.bf16.mxu0 0
    %419 = vmatpush2.bf16.msra.mxu0 0
    %420 = vmatprep.subr.bf16.mxu0 0
    %421 = vmatpush2.bf16.msra.mxu0 0
    %422 = vmatprep.subr.bf16.mxu0 0
    %423 = vmatpush2.bf16.msra.mxu0 0
    %424 = vmatprep.mubr.bf16.mxu0 0
    %425 = vmatmul.mubr.bf16.gmra.mxu0 %v320
    %v426 = vpop.f32.mrf.mxu0
    %v427 = vadd.f32 %v342, %v426
    %v428 = vpop.f32.mrf.mxu0
    %v429 = vpop.f32.mrf.mxu0
    %v430 = vadd.f32 %v342, %v429
    %v431 = vpop.f32.mrf.mxu0
    %432 = vdwg.mxu0
    %v433 = vtanh.pop %v427
    %v434 = vtanh.pop %v430
    %435 = vst [vmem:[#allocation10] sm:$0xff] %v433
    %436 = vst [vmem:[#allocation10 + $0x8] sm:$0xff] %v434
    // Predicated region
    $region46: #{tpu_custom_call.1} parent=1 // pred_check
      _
    $region47: #{tpu_custom_call.1} parent=1 // pred_check_branch
      %438 = sbr.rel (0) target = $region49
    $region48: #{tpu_custom_call.1} parent=1 // pred_region
      %s440 = ssub.s32 256, 256
      %441 = vsyncadd [#allocation4], %s440
      %s442 = sshll.u32 [#allocation10], 4
      %s443 = int_to_ptr.vmem [resolvable:$true] %s442
      %448 = dma.vmem_to_hbm [thread:$0]  %s443, 256, %s7, [#allocation4], 128, 128, 8
    $region49: #{tpu_custom_call.1} parent=1 // pred_fallthru
      _
    // Predicated region
    $region50: #{tpu_custom_call.1} parent=1 // pred_check
      _
    $region51: #{tpu_custom_call.1} parent=1 // pred_check_branch
      %450 = sbr.rel (0) target = $region53
    $region52: #{tpu_custom_call.1} parent=1 // pred_region
      %451 = dma.done [#allocation4], 256
    $region53: #{tpu_custom_call.1} parent=1 // pred_fallthru
      _
    %452 = vsyncpa [#allocation3], 1
    %453 = vsyncpa [#allocation6], 1
    %454 = vsyncpa [#allocation9], 1
    %455 = vsyncpa [#allocation4], 1

// kernel: tpu_custom_call.1
$region0: #{tpu_custom_call.1}
  #allocation0 [shape = 'u32[]', space=smem, size = 0x4, offset = 0x4, fixed_abs, tag = 'smem constant byte address 0x4 - core index']
  #allocation1 [shape = 'u32[144,128]{1,0:T(1,128)}', space=vmem, size = 0x12000, scoped, tag = 'internal scratch']
  %s0 = inlined_call_operand.hbm [shape: bf16[16,128], index: 0, kind: input, shape index: {}]
  %s1 = inlined_call_operand.hbm [shape: bf16[128,128], index: 1, kind: input, shape index: {}]
  %s2 = inlined_call_operand.hbm [shape: bf16[128,128], index: 2, kind: input, shape index: {}]
  %s3 = inlined_call_operand.hbm [shape: bf16[128,128], index: 3, kind: input, shape index: {}]
  %s4 = inlined_call_operand.vmem [shape: f32[1,128], index: 4, kind: input, shape index: {}]
  %s5 = inlined_call_operand.vmem [shape: f32[1,128], index: 5, kind: input, shape index: {}]
  %s6 = inlined_call_operand.vmem [shape: f32[1,128], index: 6, kind: input, shape index: {}]
  %s7 = inlined_call_operand.hbm [shape: f32[16,128], index: 7, kind: output, shape index: {}]
  %s8 = sld [smem:[#allocation0]]
  $region54: #{tpu_custom_call.1} parent=0
    _
  %s10 = ssub.s32 1, %s8
  %s11 = scalar_select 0, %s10, %s8
  $region1: #{tpu_custom_call.1} parent=0
    #allocation2 [shape = 'u8[4096]{0}', space=vmem, size = 0x1000, scoped, tag = 'input window, operand 0, single buffered']
    #allocation3 [shape = 's32[1]{0}', space=sflag, size = 0x4, scoped, tag = 'scoped memory for tpu_custom_call.1']
    #allocation4 [shape = 's32[1]{0}', space=sflag, size = 0x4, scoped, tag = 'scoped memory for tpu_custom_call.1']
    #allocation5 [shape = 'u8[32768]{0}', space=vmem, size = 0x8000, scoped, tag = 'input window, operand 1, single buffered']
    #allocation6 [shape = 's32[1]{0}', space=sflag, size = 0x4, scoped, tag = 'scoped memory for tpu_custom_call.1']
    #allocation7 [shape = 'u8[32768]{0}', space=vmem, size = 0x8000, scoped, tag = 'input window, operand 2, single buffered']
    #allocation8 [shape = 'u8[32768]{0}', space=vmem, size = 0x8000, scoped, tag = 'input window, operand 3, single buffered']
    #allocation9 [shape = 's32[1]{0}', space=sflag, size = 0x4, scoped, tag = 'scoped memory for tpu_custom_call.1']
    #allocation10 [shape = 'u8[8192]{0}', space=vmem, size = 0x2000, scoped, tag = 'output window, operand 0, single buffered']
    %12 = vsyncpa [#allocation3], 0
    %13 = vsyncpa [#allocation6], 0
    %14 = vsyncpa [#allocation9], 0
    %15 = vsyncpa [#allocation4], 0
    // Predicated region
    $region2: #{tpu_custom_call.1} parent=1 // pred_check
      _
    $region3: #{tpu_custom_call.1} parent=1 // pred_check_branch
      %17 = sbr.rel (0) target = $region5
    $region4: #{tpu_custom_call.1} parent=1 // pred_region
      %s19 = ssub.s32 128, 128
      %20 = vsyncadd [#allocation3], %s19
      %s21 = sshll.u32 [#allocation2], 4
      %s22 = int_to_ptr.vmem [resolvable:$true] %s21
      %27 = dma.hbm_to_vmem [thread:$0]  %s0, 128, %s22, [#allocation3], 64, 64, 4
    $region5: #{tpu_custom_call.1} parent=1 // pred_fallthru
      _
    // Predicated region
    $region6: #{tpu_custom_call.1} parent=1 // pred_check
      _
    $region7: #{tpu_custom_call.1} parent=1 // pred_check_branch
      %29 = sbr.rel (0) target = $region9
    $region8: #{tpu_custom_call.1} parent=1 // pred_region
      %s31 = ssub.s32 1024, 1024
      %32 = vsyncadd [#allocation6], %s31
      %s33 = sshll.u32 [#allocation5], 4
      %s34 = int_to_ptr.vmem [resolvable:$true] %s33
      %39 = dma.hbm_to_vmem [thread:$0]  %s1, 1024, %s34, [#allocation6], 64, 64, 4
    $region9: #{tpu_custom_call.1} parent=1 // pred_fallthru
      _
    // Predicated region
    $region10: #{tpu_custom_call.1} parent=1 // pred_check
      _
    $region11: #{tpu_custom_call.1} parent=1 // pred_check_branch
      %41 = sbr.rel (0) target = $region13
    $region12: #{tpu_custom_call.1} parent=1 // pred_region
      %s43 = ssub.s32 1024, 1024
      %44 = vsyncadd [#allocation6], %s43
      %s45 = sshll.u32 [#allocation7], 4
      %s46 = int_to_ptr.vmem [resolvable:$true] %s45
      %51 = dma.hbm_to_vmem [thread:$0]  %s2, 1024, %s46, [#allocation6], 64, 64, 4
    $region13: #{tpu_custom_call.1} parent=1 // pred_fallthru
      _
    // Predicated region
    $region14: #{tpu_custom_call.1} parent=1 // pred_check
      _
    $region15: #{tpu_custom_call.1} parent=1 // pred_check_branch
      %53 = sbr.rel (0) target = $region17
    $region16: #{tpu_custom_call.1} parent=1 // pred_region
      %s55 = ssub.s32 1024, 1024
      %56 = vsyncadd [#allocation9], %s55
      %s57 = sshll.u32 [#allocation8], 4
      %s58 = int_to_ptr.vmem [resolvable:$true] %s57
      %63 = dma.hbm_to_vmem [thread:$0]  %s3, 1024, %s58, [#allocation9], 64, 64, 4
    $region17: #{tpu_custom_call.1} parent=1 // pred_fallthru
      _
    // Predicated region
    $region18: #{tpu_custom_call.1} parent=1 // pred_check
      _
    $region19: #{tpu_custom_call.1} parent=1 // pred_check_branch
      %65 = sbr.rel (0) target = $region21
    $region20: #{tpu_custom_call.1} parent=1 // pred_region
      _
    $region21: #{tpu_custom_call.1} parent=1 // pred_fallthru
      _
    // Predicated region
    $region22: #{tpu_custom_call.1} parent=1 // pred_check
      _
    $region23: #{tpu_custom_call.1} parent=1 // pred_check_branch
      %67 = sbr.rel (0) target = $region25
    $region24: #{tpu_custom_call.1} parent=1 // pred_region
      _
    $region25: #{tpu_custom_call.1} parent=1 // pred_fallthru
      _
    // Predicated region
    $region26: #{tpu_custom_call.1} parent=1 // pred_check
      _
    $region27: #{tpu_custom_call.1} parent=1 // pred_check_branch
      %69 = sbr.rel (0) target = $region29
    $region28: #{tpu_custom_call.1} parent=1 // pred_region
      _
    $region29: #{tpu_custom_call.1} parent=1 // pred_fallthru
      _
    // Predicated region
    $region30: #{tpu_custom_call.1} parent=1 // pred_check
      _
    $region31: #{tpu_custom_call.1} parent=1 // pred_check_branch
      %71 = sbr.rel (0) target = $region33
    $region32: #{tpu_custom_call.1} parent=1 // pred_region
      %72 = dma.done [#allocation3], 128
    $region33: #{tpu_custom_call.1} parent=1 // pred_fallthru
      _
    // Predicated region
    $region34: #{tpu_custom_call.1} parent=1 // pred_check
      _
    $region35: #{tpu_custom_call.1} parent=1 // pred_check_branch
      %74 = sbr.rel (0) target = $region37
    $region36: #{tpu_custom_call.1} parent=1 // pred_region
      %75 = dma.done [#allocation6], 1024
    $region37: #{tpu_custom_call.1} parent=1 // pred_fallthru
      _
    // Predicated region
    $region38: #{tpu_custom_call.1} parent=1 // pred_check
      _
    $region39: #{tpu_custom_call.1} parent=1 // pred_check_branch
      %77 = sbr.rel (0) target = $region41
    $region40: #{tpu_custom_call.1} parent=1 // pred_region
      %78 = dma.done [#allocation6], 1024
    $region41: #{tpu_custom_call.1} parent=1 // pred_fallthru
      _
    // Predicated region
    $region42: #{tpu_custom_call.1} parent=1 // pred_check
      _
    $region43: #{tpu_custom_call.1} parent=1 // pred_check_branch
      %80 = sbr.rel (0) target = $region45
    $region44: #{tpu_custom_call.1} parent=1 // pred_region
      %81 = dma.done [#allocation9], 1024
    $region45: #{tpu_custom_call.1} parent=1 // pred_fallthru
      _
    %v83 = vld [vmem:[#allocation2] sm:$0xf]
    %v84 = vld [vmem:[#allocation2 + $0x4] sm:$0xf]
    %v85 = vld [vmem:[#allocation5] sm:$0xf]
    %v86 = vld [vmem:[#allocation5 + $0x4] sm:$0xf]
    %v87 = vld [vmem:[#allocation5 + $0x8] sm:$0xf]
    %v88 = vld [vmem:[#allocation5 + $0xc] sm:$0xf]
    %v89 = vld [vmem:[#allocation5 + $0x10] sm:$0xf]
    %v90 = vld [vmem:[#allocation5 + $0x14] sm:$0xf]
    %v91 = vld [vmem:[#allocation5 + $0x18] sm:$0xf]
    %v92 = vld [vmem:[#allocation5 + $0x1c] sm:$0xf]
    %v93 = vld [vmem:[#allocation5 + $0x20] sm:$0xf]
    %v94 = vld [vmem:[#allocation5 + $0x24] sm:$0xf]
    %v95 = vld [vmem:[#allocation5 + $0x28] sm:$0xf]
    %v96 = vld [vmem:[#allocation5 + $0x2c] sm:$0xf]
    %v97 = vld [vmem:[#allocation5 + $0x30] sm:$0xf]
    %v98 = vld [vmem:[#allocation5 + $0x34] sm:$0xf]
    %v99 = vld [vmem:[#allocation5 + $0x38] sm:$0xf]
    %v100 = vld [vmem:[#allocation5 + $0x3c] sm:$0xf]
    %v101 = vld [vmem:[%s4] sm:$0x1]
    %v103 = vlaneseq
    %v104 = vshrl.u32 %v103, 7
    %v105 = vsub.s32 0, %v104
    %v106 = vrot.slane %v101, %v105
    %v110 = vunpack.c.l.b16 %v83
    %v111 = vunpack.c.l.b16 %v84
    %v112 = vpack.c.b16 %v111, %v110
    %v130 = vunpack.c.l.b16 %v85
    %v131 = vunpack.c.l.b16 %v86
    %v132 = vunpack.c.l.b16 %v87
    %v133 = vunpack.c.l.b16 %v88
    %v134 = vunpack.c.l.b16 %v89
    %v135 = vunpack.c.l.b16 %v90
    %v136 = vunpack.c.l.b16 %v91
    %v137 = vunpack.c.l.b16 %v92
    %v138 = vunpack.c.l.b16 %v93
    %v139 = vunpack.c.l.b16 %v94
    %v140 = vunpack.c.l.b16 %v95
    %v141 = vunpack.c.l.b16 %v96
    %v142 = vunpack.c.l.b16 %v97
    %v143 = vunpack.c.l.b16 %v98
    %v144 = vunpack.c.l.b16 %v99
    %v145 = vunpack.c.l.b16 %v100
    %v146 = vpack.c.b16 %v131, %v130
    %v147 = vpack.c.b16 %v133, %v132
    %v148 = vpack.c.b16 %v135, %v134
    %v149 = vpack.c.b16 %v137, %v136
    %v150 = vpack.c.b16 %v139, %v138
    %v151 = vpack.c.b16 %v141, %v140
    %v152 = vpack.c.b16 %v143, %v142
    %v153 = vpack.c.b16 %v145, %v144
    %162 = vmatprep.subr.bf16.mxu0 0
    %163 = vmatpush1.bf16.msra.mxu0 %v153
    %164 = vmatprep.subr.bf16.mxu0 0
    %165 = vmatpush1.bf16.msra.mxu0 %v152
    %166 = vmatprep.subr.bf16.mxu0 0
    %167 = vmatpush1.bf16.msra.mxu0 %v151
    %168 = vmatprep.subr.bf16.mxu0 0
    %169 = vmatpush1.bf16.msra.mxu0 %v150
    %170 = vmatprep.subr.bf16.mxu0 0
    %171 = vmatpush1.bf16.msra.mxu0 %v149
    %172 = vmatprep.subr.bf16.mxu0 0
    %173 = vmatpush1.bf16.msra.mxu0 %v148
    %174 = vmatprep.subr.bf16.mxu0 0
    %175 = vmatpush1.bf16.msra.mxu0 %v147
    %176 = vmatprep.subr.bf16.mxu0 0
    %177 = vmatpush1.bf16.msra.mxu0 %v146
    %178 = vmatprep.subr.bf16.mxu0 0
    %179 = vmatpush2.bf16.msra.mxu0 0
    %180 = vmatprep.subr.bf16.mxu0 0
    %181 = vmatpush2.bf16.msra.mxu0 0
    %182 = vmatprep.subr.bf16.mxu0 0
    %183 = vmatpush2.bf16.msra.mxu0 0
    %184 = vmatprep.subr.bf16.mxu0 0
    %185 = vmatpush2.bf16.msra.mxu0 0
    %186 = vmatprep.subr.bf16.mxu0 0
    %187 = vmatpush2.bf16.msra.mxu0 0
    %188 = vmatprep.subr.bf16.mxu0 0
    %189 = vmatpush2.bf16.msra.mxu0 0
    %190 = vmatprep.subr.bf16.mxu0 0
    %191 = vmatpush2.bf16.msra.mxu0 0
    %192 = vmatprep.subr.bf16.mxu0 0
    %193 = vmatpush2.bf16.msra.mxu0 0
    %194 = vmatprep.mubr.bf16.mxu0 0
    %195 = vmatmul.mubr.bf16.gmra.mxu0 %v112
    %v196 = vpop.f32.mrf.mxu0
    %v197 = vadd.f32 %v106, %v196
    %v198 = vpop.f32.mrf.mxu0
    %v199 = vpop.f32.mrf.mxu0
    %v200 = vadd.f32 %v106, %v199
    %v201 = vpop.f32.mrf.mxu0
    %202 = vdwg.mxu0
    %v203 = vtanh.pop %v197
    %v204 = vtanh.pop %v200
    %v205 = vpack.c.bf16 %v204, %v203
    %v206 = vld [vmem:[#allocation7] sm:$0xf]
    %v207 = vld [vmem:[#allocation7 + $0x4] sm:$0xf]
    %v208 = vld [vmem:[#allocation7 + $0x8] sm:$0xf]
    %v209 = vld [vmem:[#allocation7 + $0xc] sm:$0xf]
    %v210 = vld [vmem:[#allocation7 + $0x10] sm:$0xf]
    %v211 = vld [vmem:[#allocation7 + $0x14] sm:$0xf]
    %v212 = vld [vmem:[#allocation7 + $0x18] sm:$0xf]
    %v213 = vld [vmem:[#allocation7 + $0x1c] sm:$0xf]
    %v214 = vld [vmem:[#allocation7 + $0x20] sm:$0xf]
    %v215 = vld [vmem:[#allocation7 + $0x24] sm:$0xf]
    %v216 = vld [vmem:[#allocation7 + $0x28] sm:$0xf]
    %v217 = vld [vmem:[#allocation7 + $0x2c] sm:$0xf]
    %v218 = vld [vmem:[#allocation7 + $0x30] sm:$0xf]
    %v219 = vld [vmem:[#allocation7 + $0x34] sm:$0xf]
    %v220 = vld [vmem:[#allocation7 + $0x38] sm:$0xf]
    %v221 = vld [vmem:[#allocation7 + $0x3c] sm:$0xf]
    %v222 = vld [vmem:[%s5] sm:$0x1]
    %v224 = vlaneseq
    %v225 = vshrl.u32 %v224, 7
    %v226 = vsub.s32 0, %v225
    %v227 = vrot.slane %v222, %v226
    %v245 = vunpack.c.l.b16 %v206
    %v246 = vunpack.c.l.b16 %v207
    %v247 = vunpack.c.l.b16 %v208
    %v248 = vunpack.c.l.b16 %v209
    %v249 = vunpack.c.l.b16 %v210
    %v250 = vunpack.c.l.b16 %v211
    %v251 = vunpack.c.l.b16 %v212
    %v252 = vunpack.c.l.b16 %v213
    %v253 = vunpack.c.l.b16 %v214
    %v254 = vunpack.c.l.b16 %v215
    %v255 = vunpack.c.l.b16 %v216
    %v256 = vunpack.c.l.b16 %v217
    %v257 = vunpack.c.l.b16 %v218
    %v258 = vunpack.c.l.b16 %v219
    %v259 = vunpack.c.l.b16 %v220
    %v260 = vunpack.c.l.b16 %v221
    %v261 = vpack.c.b16 %v246, %v245
    %v262 = vpack.c.b16 %v248, %v247
    %v263 = vpack.c.b16 %v250, %v249
    %v264 = vpack.c.b16 %v252, %v251
    %v265 = vpack.c.b16 %v254, %v253
    %v266 = vpack.c.b16 %v256, %v255
    %v267 = vpack.c.b16 %v258, %v257
    %v268 = vpack.c.b16 %v260, %v259
    %277 = vmatprep.subr.bf16.mxu0 0
    %278 = vmatpush1.bf16.msra.mxu0 %v268
    %279 = vmatprep.subr.bf16.mxu0 0
    %280 = vmatpush1.bf16.msra.mxu0 %v267
    %281 = vmatprep.subr.bf16.mxu0 0
    %282 = vmatpush1.bf16.msra.mxu0 %v266
    %283 = vmatprep.subr.bf16.mxu0 0
    %284 = vmatpush1.bf16.msra.mxu0 %v265
    %285 = vmatprep.subr.bf16.mxu0 0
    %286 = vmatpush1.bf16.msra.mxu0 %v264
    %287 = vmatprep.subr.bf16.mxu0 0
    %288 = vmatpush1.bf16.msra.mxu0 %v263
    %289 = vmatprep.subr.bf16.mxu0 0
    %290 = vmatpush1.bf16.msra.mxu0 %v262
    %291 = vmatprep.subr.bf16.mxu0 0
    %292 = vmatpush1.bf16.msra.mxu0 %v261
    %293 = vmatprep.subr.bf16.mxu0 0
    %294 = vmatpush2.bf16.msra.mxu0 0
    %295 = vmatprep.subr.bf16.mxu0 0
    %296 = vmatpush2.bf16.msra.mxu0 0
    %297 = vmatprep.subr.bf16.mxu0 0
    %298 = vmatpush2.bf16.msra.mxu0 0
    %299 = vmatprep.subr.bf16.mxu0 0
    %300 = vmatpush2.bf16.msra.mxu0 0
    %301 = vmatprep.subr.bf16.mxu0 0
    %302 = vmatpush2.bf16.msra.mxu0 0
    %303 = vmatprep.subr.bf16.mxu0 0
    %304 = vmatpush2.bf16.msra.mxu0 0
    %305 = vmatprep.subr.bf16.mxu0 0
    %306 = vmatpush2.bf16.msra.mxu0 0
    %307 = vmatprep.subr.bf16.mxu0 0
    %308 = vmatpush2.bf16.msra.mxu0 0
    %309 = vmatprep.mubr.bf16.mxu0 0
    %310 = vmatmul.mubr.bf16.gmra.mxu0 %v205
    %v311 = vpop.f32.mrf.mxu0
    %v312 = vadd.f32 %v227, %v311
    %v313 = vpop.f32.mrf.mxu0
    %v314 = vpop.f32.mrf.mxu0
    %v315 = vadd.f32 %v227, %v314
    %v316 = vpop.f32.mrf.mxu0
    %317 = vdwg.mxu0
    %v318 = vtanh.pop %v312
    %v319 = vtanh.pop %v315
    %v320 = vpack.c.bf16 %v319, %v318
    %v321 = vld [vmem:[#allocation8] sm:$0xf]
    %v322 = vld [vmem:[#allocation8 + $0x4] sm:$0xf]
    %v323 = vld [vmem:[#allocation8 + $0x8] sm:$0xf]
    %v324 = vld [vmem:[#allocation8 + $0xc] sm:$0xf]
    %v325 = vld [vmem:[#allocation8 + $0x10] sm:$0xf]
    %v326 = vld [vmem:[#allocation8 + $0x14] sm:$0xf]
    %v327 = vld [vmem:[#allocation8 + $0x18] sm:$0xf]
    %v328 = vld [vmem:[#allocation8 + $0x1c] sm:$0xf]
    %v329 = vld [vmem:[#allocation8 + $0x20] sm:$0xf]
    %v330 = vld [vmem:[#allocation8 + $0x24] sm:$0xf]
    %v331 = vld [vmem:[#allocation8 + $0x28] sm:$0xf]
    %v332 = vld [vmem:[#allocation8 + $0x2c] sm:$0xf]
    %v333 = vld [vmem:[#allocation8 + $0x30] sm:$0xf]
    %v334 = vld [vmem:[#allocation8 + $0x34] sm:$0xf]
    %v335 = vld [vmem:[#allocation8 + $0x38] sm:$0xf]
    %v336 = vld [vmem:[#allocation8 + $0x3c] sm:$0xf]
    %v337 = vld [vmem:[%s6] sm:$0x1]
    %v339 = vlaneseq
    %v340 = vshrl.u32 %v339, 7
    %v341 = vsub.s32 0, %v340
    %v342 = vrot.slane %v337, %v341
    %v360 = vunpack.c.l.b16 %v321
    %v361 = vunpack.c.l.b16 %v322
    %v362 = vunpack.c.l.b16 %v323
    %v363 = vunpack.c.l.b16 %v324
    %v364 = vunpack.c.l.b16 %v325
    %v365 = vunpack.c.l.b16 %v326
    %v366 = vunpack.c.l.b16 %v327
    %v367 = vunpack.c.l.b16 %v328
    %v368 = vunpack.c.l.b16 %v329
    %v369 = vunpack.c.l.b16 %v330
    %v370 = vunpack.c.l.b16 %v331
    %v371 = vunpack.c.l.b16 %v332
    %v372 = vunpack.c.l.b16 %v333
    %v373 = vunpack.c.l.b16 %v334
    %v374 = vunpack.c.l.b16 %v335
    %v375 = vunpack.c.l.b16 %v336
    %v376 = vpack.c.b16 %v361, %v360
    %v377 = vpack.c.b16 %v363, %v362
    %v378 = vpack.c.b16 %v365, %v364
    %v379 = vpack.c.b16 %v367, %v366
    %v380 = vpack.c.b16 %v369, %v368
    %v381 = vpack.c.b16 %v371, %v370
    %v382 = vpack.c.b16 %v373, %v372
    %v383 = vpack.c.b16 %v375, %v374
    %392 = vmatprep.subr.bf16.mxu0 0
    %393 = vmatpush1.bf16.msra.mxu0 %v383
    %394 = vmatprep.subr.bf16.mxu0 0
    %395 = vmatpush1.bf16.msra.mxu0 %v382
    %396 = vmatprep.subr.bf16.mxu0 0
    %397 = vmatpush1.bf16.msra.mxu0 %v381
    %398 = vmatprep.subr.bf16.mxu0 0
    %399 = vmatpush1.bf16.msra.mxu0 %v380
    %400 = vmatprep.subr.bf16.mxu0 0
    %401 = vmatpush1.bf16.msra.mxu0 %v379
    %402 = vmatprep.subr.bf16.mxu0 0
    %403 = vmatpush1.bf16.msra.mxu0 %v378
    %404 = vmatprep.subr.bf16.mxu0 0
    %405 = vmatpush1.bf16.msra.mxu0 %v377
    %406 = vmatprep.subr.bf16.mxu0 0
    %407 = vmatpush1.bf16.msra.mxu0 %v376
    %408 = vmatprep.subr.bf16.mxu0 0
    %409 = vmatpush2.bf16.msra.mxu0 0
    %410 = vmatprep.subr.bf16.mxu0 0
    %411 = vmatpush2.bf16.msra.mxu0 0
    %412 = vmatprep.subr.bf16.mxu0 0
    %413 = vmatpush2.bf16.msra.mxu0 0
    %414 = vmatprep.subr.bf16.mxu0 0
    %415 = vmatpush2.bf16.msra.mxu0 0
    %416 = vmatprep.subr.bf16.mxu0 0
    %417 = vmatpush2.bf16.msra.mxu0 0
    %418 = vmatprep.subr.bf16.mxu0 0
    %419 = vmatpush2.bf16.msra.mxu0 0
    %420 = vmatprep.subr.bf16.mxu0 0
    %421 = vmatpush2.bf16.msra.mxu0 0
    %422 = vmatprep.subr.bf16.mxu0 0
    %423 = vmatpush2.bf16.msra.mxu0 0
    %424 = vmatprep.mubr.bf16.mxu0 0
    %425 = vmatmul.mubr.bf16.gmra.mxu0 %v320
    %v426 = vpop.f32.mrf.mxu0
    %v427 = vadd.f32 %v342, %v426
    %v428 = vpop.f32.mrf.mxu0
    %v429 = vpop.f32.mrf.mxu0
    %v430 = vadd.f32 %v342, %v429
    %v431 = vpop.f32.mrf.mxu0
    %432 = vdwg.mxu0
    %v433 = vtanh.pop %v427
    %v434 = vtanh.pop %v430
    %435 = vst [vmem:[#allocation10] sm:$0xff] %v433
    %436 = vst [vmem:[#allocation10 + $0x8] sm:$0xff] %v434
    // Predicated region
    $region46: #{tpu_custom_call.1} parent=1 // pred_check
      _
    $region47: #{tpu_custom_call.1} parent=1 // pred_check_branch
      %438 = sbr.rel (0) target = $region49
    $region48: #{tpu_custom_call.1} parent=1 // pred_region
      %s440 = ssub.s32 256, 256
      %441 = vsyncadd [#allocation4], %s440
      %s442 = sshll.u32 [#allocation10], 4
      %s443 = int_to_ptr.vmem [resolvable:$true] %s442
      %448 = dma.vmem_to_hbm [thread:$0]  %s443, 256, %s7, [#allocation4], 128, 128, 8
    $region49: #{tpu_custom_call.1} parent=1 // pred_fallthru
      _
    // Predicated region
    $region50: #{tpu_custom_call.1} parent=1 // pred_check
      _
    $region51: #{tpu_custom_call.1} parent=1 // pred_check_branch
      %450 = sbr.rel (0) target = $region53
    $region52: #{tpu_custom_call.1} parent=1 // pred_region
      %451 = dma.done [#allocation4], 256
    $region53: #{tpu_custom_call.1} parent=1 // pred_fallthru
      _
    %452 = vsyncpa [#allocation3], 1
    %453 = vsyncpa [#allocation6], 1
    %454 = vsyncpa [#allocation9], 1
    %455 = vsyncpa [#allocation4], 1

</llo_original>
